<compile_context>
chip_gen: v7x
topology: tpu7x:2x2x1
jax: 0.10.0
libtpu: 0.0.40
codegen_flags: <defaults>
</compile_context>

<pallas_src>
import functools

import jax
import jax.numpy as jnp
from jax import lax
from jax.experimental import pallas as pl
from jax.experimental.pallas import tpu as pltpu

LANE = 128      # lane width: class dim padded to a multiple of this
SUBLANE = 8     # f32 sublane tile: channel dims padded to a multiple of this


def _round_up(n, m):
    return -(-n // m) * m


# ---------------------------------------------------------------------------
# Fused kernel: 3x3 conv (stride 1, pad 1) + bias + ReLU + Linear, per image
# ---------------------------------------------------------------------------
def _fused_conv_fc_kernel(x_ref, wc_ref, bc_ref, wf_ref, bf_ref, o_ref, *,
                          width, hw, nc_pad):
    # x_ref:  [3, Cin_pad, (H+2)*W]  dx-shifted, channel-major, spatially flattened image
    # wc_ref: [Cout_r, 9*Cin_pad]    conv weight, k = (dy*3 + dx)*Cin_pad + ci
    # bc_ref: [Cout_r, 1]            conv bias (padded rows are 0)
    # wf_ref: [H*W, Cout_r*NC_pad]   fc weight, wf[p, c*NC_pad + n] = fc_w[n, c*H*W + p]
    # bf_ref: [1, NC_pad]            fc bias (padded classes are 0)
    # o_ref:  [1, NC_pad]            logits for this image
    cout_r = wc_ref.shape[0]

    # Transposed im2col A2 [9*Cin_pad, HW]: nine contiguous lane slices of the staged
    # input, concatenated along the (sublane-tile-aligned) contraction dim.
    planes = [x_ref[dx] for dx in range(3)]                  # each [Cin_pad, (H+2)*W]
    taps = [planes[dx][:, dy * width: dy * width + hw]       # tap index t = dy*3 + dx
            for dy in range(3) for dx in range(3)]           # each [Cin_pad, HW]
    a2 = jnp.concatenate(taps, axis=0)                       # [9*Cin_pad, HW]

    # Conv as ONE MXU matmul -> channel-major, lane-dense [Cout_r, HW]; bias + ReLU.
    conv = jnp.dot(wc_ref[...], a2, preferred_element_type=jnp.float32)
    conv = jnp.maximum(conv + bc_ref[...], 0.0)

    # FC as ONE MXU matmul contracting HW. tmp[c', c*NC_pad + n] is channel c's weight
    # block applied to channel c' features, so the true logits are the block-diagonal
    # sum over c (static [1, NC_pad] slices + adds; padded channels contribute 0).
    tmp = jnp.dot(conv, wf_ref[...], preferred_element_type=jnp.float32)
    out = bf_ref[...]
    for c in range(cout_r):
        out = out + tmp[c:c + 1, c * nc_pad:(c + 1) * nc_pad]
    o_ref[...] = out


# ---------------------------------------------------------------------------
# One-time parameter preparation (TPU-friendly layouts; done OUTSIDE forward)
# ---------------------------------------------------------------------------
def prepare_params(params):
    conv_w = jnp.asarray(params["conv_w"], jnp.float32)   # [Cout, Cin, 3, 3]
    conv_b = jnp.asarray(params["conv_b"], jnp.float32)   # [Cout]
    fc_w = jnp.asarray(params["fc_w"], jnp.float32)       # [NC, Cout*H*W]
    fc_b = jnp.asarray(params["fc_b"], jnp.float32)       # [NC]

    c_out, c_in, kh, kw = conv_w.shape
    assert (kh, kw) == (3, 3), "conv_component assumed to be a 3x3 convolution"
    nc = fc_w.shape[0]
    hw = fc_w.shape[1] // c_out                            # H*W

    cin_pad = _round_up(c_in, SUBLANE)
    cout_r = _round_up(c_out, SUBLANE)
    nc_pad = _round_up(nc, LANE)

    # conv weight -> [Cout_r, 9*Cin_pad], k index = (dy*3 + dx)*Cin_pad + ci
    wc = jnp.transpose(conv_w, (0, 2, 3, 1))               # [Cout, 3, 3, Cin]
    wc = jnp.pad(wc, ((0, cout_r - c_out), (0, 0), (0, 0), (0, cin_pad - c_in)))
    wc = wc.reshape(cout_r, kh * kw * cin_pad)
    bc = jnp.pad(conv_b, (0, cout_r - c_out)).reshape(cout_r, 1)

    # COMPACT fc weight: wf[p, c*NC_pad + n] = fc_w[n, c*HW + p]; padded c / n are 0.
    wf = fc_w.reshape(nc, c_out, hw)                       # [N, C, P]
    wf = jnp.transpose(wf, (2, 1, 0))                      # [P, C, N]
    wf = jnp.pad(wf, ((0, 0), (0, cout_r - c_out), (0, nc_pad - nc)))
    wf = wf.reshape(hw, cout_r * nc_pad)                   # [HW, Cout_r*NC_pad]
    bf = jnp.pad(fc_b, (0, nc_pad - nc)).reshape(1, nc_pad)

    return {"conv_w": wc, "conv_b": bc, "fc_w": wf, "fc_b": bf}


# ---------------------------------------------------------------------------
# Forward pass
# ---------------------------------------------------------------------------
def pretrain_classifier_forward(x, prepared, *, num_classes):
    wc = prepared["conv_w"]                  # [Cout_r, 9*Cin_pad]
    bc = prepared["conv_b"]                  # [Cout_r, 1]
    wf = prepared["fc_w"]                    # [HW, Cout_r*NC_pad]
    bf = prepared["fc_b"]                    # [1, NC_pad]

    b, c_in, h, w = x.shape
    cout_r, k9 = wc.shape
    cin_pad = k9 // 9
    hw = wf.shape[0]
    nc_pad = bf.shape[1]
    assert hw == h * w, "fc weight does not match the conv output spatial size"
    stage_lanes = (h + 2) * w

    # Host-side staging (tiny): zero-pad channels to Cin_pad, spatial pad 1, then build
    # 3 dx-shifted channel-major copies with spatial flattened so every in-kernel tap is
    # a contiguous lane slice: stage[b, dx, ci, yp*W + x] = xpad[b, ci, yp, x + dx].
    xp = jnp.pad(x.astype(jnp.float32),
                 ((0, 0), (0, cin_pad - c_in), (1, 1), (1, 1)))     # [B, Cin_pad, H+2, W+2]
    stage = jnp.stack([xp[:, :, :, dx:dx + w] for dx in range(3)], axis=1)
    stage = stage.reshape(b, 3, cin_pad, stage_lanes)               # [B, 3, Cin_pad, (H+2)*W]

    kernel = functools.partial(_fused_conv_fc_kernel, width=w, hw=hw, nc_pad=nc_pad)

    out = pl.pallas_call(
        kernel,
        out_shape=jax.ShapeDtypeStruct((b, 1, nc_pad), jnp.float32),
        grid_spec=pltpu.PrefetchScalarGridSpec(
            num_scalar_prefetch=0,
            grid=(b,),
            in_specs=[
                # per-image staged input
                pl.BlockSpec((None, 3, cin_pad, stage_lanes), lambda i: (i, 0, 0, 0)),
                # weights/biases: constant index maps -> fetched once, VMEM-resident
                pl.BlockSpec((cout_r, k9), lambda i: (0, 0)),
                pl.BlockSpec((cout_r, 1), lambda i: (0, 0)),
                pl.BlockSpec((hw, cout_r * nc_pad), lambda i: (0, 0)),
                pl.BlockSpec((1, nc_pad), lambda i: (0, 0)),
            ],
            out_specs=pl.BlockSpec((None, 1, nc_pad), lambda i: (i, 0, 0)),
        ),
        compiler_params=pltpu.CompilerParams(
            dimension_semantics=("parallel",),        # shards images across v7x's 2 TCs
            vmem_limit_bytes=32 * 1024 * 1024,
        ),
    )(stage, wc, bc, wf, bf)

    return out[:, 0, :num_classes]


# ---------------------------------------------------------------------------
# Pure-JAX reference (PyTorch semantics) for a silent correctness check
# ---------------------------------------------------------------------------
def _reference_forward(x, params):
    conv = lax.conv_general_dilated(
        x, params["conv_w"], window_strides=(1, 1), padding=((1, 1), (1, 1)),
        dimension_numbers=("NCHW", "OIHW", "NCHW"))
    conv = jnp.maximum(conv + params["conv_b"][None, :, None, None], 0.0)
    feat = conv.reshape(x.shape[0], -1)
    return feat @ params["fc_w"].T + params["fc_b"]


if __name__ == "__main__":
    key = jax.random.PRNGKey(0)
    k_x, k_cw, k_cb, k_fw, k_fb = jax.random.split(key, 5)

    B, C_in, H, W = 2, 4, 16, 16
    C_out, KH, KW = 8, 3, 3
    num_classes = 10

    x = jax.random.normal(k_x, (B, C_in, H, W), dtype=jnp.float32)
    params = {
        "conv_w": jax.random.normal(k_cw, (C_out, C_in, KH, KW), jnp.float32) * 0.1,
        "conv_b": jax.random.normal(k_cb, (C_out,), jnp.float32) * 0.1,
        "fc_w": jax.random.normal(k_fw, (num_classes, C_out * H * W), jnp.float32) * 0.02,
        "fc_b": jax.random.normal(k_fb, (num_classes,), jnp.float32) * 0.02,
    }

    prepared = jax.block_until_ready(prepare_params(params))

    fwd = jax.jit(functools.partial(pretrain_classifier_forward,
                                    num_classes=num_classes))
    out = jax.block_until_ready(fwd(x, prepared))

    ref = jax.block_until_ready(_reference_forward(x, params))
    if not jnp.allclose(out, ref, atol=1e-3, rtol=1e-3):
        raise AssertionError("Pallas output does not match reference")

    print("KERNEL_OK")
</pallas_src>

<mosaic_0001>
module attributes {stable_mosaic.version = 11 : i64} {
  func.func @_fused_conv_fc_kernel(%arg0: i32, %arg1: memref<1x3x8x288xf32, #tpu.memory_space<vmem>>, %arg2: memref<8x72xf32, #tpu.memory_space<vmem>>, %arg3: memref<8x1xf32, #tpu.memory_space<vmem>>, %arg4: memref<256x1024xf32, #tpu.memory_space<vmem>>, %arg5: memref<1x128xf32, #tpu.memory_space<vmem>>, %arg6: memref<1x1x128xf32, #tpu.memory_space<vmem>>) attributes {dimension_semantics = [#tpu.dimension_semantics<parallel>], iteration_bounds = array<i64: 2>, scalar_prefetch = 0 : i64, scratch_operands = 0 : i64, tpu.core_type = #tpu.core_type<tc>, window_params = [{transform_indices = @transform_0, window_bounds = array<i64: 1, 3, 8, 288>}, {pipeline_mode = #tpu.pipeline_mode<synchronous>, transform_indices = @transform_1, window_bounds = array<i64: 8, 72>}, {pipeline_mode = #tpu.pipeline_mode<synchronous>, transform_indices = @transform_2, window_bounds = array<i64: 8, 1>}, {pipeline_mode = #tpu.pipeline_mode<synchronous>, transform_indices = @transform_3, window_bounds = array<i64: 256, 1024>}, {pipeline_mode = #tpu.pipeline_mode<synchronous>, transform_indices = @transform_4, window_bounds = array<i64: 1, 128>}, {transform_indices = @transform_5, window_bounds = array<i64: 1, 1, 128>}]} {
    %c0 = arith.constant 0 : index
    %c0_0 = arith.constant 0 : index
    %c0_1 = arith.constant 0 : index
    %c0_2 = arith.constant 0 : index
    %0 = vector.load %arg1[%c0, %c0_0, %c0_1, %c0_2] : memref<1x3x8x288xf32, #tpu.memory_space<vmem>>, vector<1x1x8x288xf32>
    %1 = vector.shape_cast %0 : vector<1x1x8x288xf32> to vector<8x288xf32>
    %c0_3 = arith.constant 0 : index
    %c1 = arith.constant 1 : index
    %c0_4 = arith.constant 0 : index
    %c0_5 = arith.constant 0 : index
    %2 = vector.load %arg1[%c0_3, %c1, %c0_4, %c0_5] : memref<1x3x8x288xf32, #tpu.memory_space<vmem>>, vector<1x1x8x288xf32>
    %3 = vector.shape_cast %2 : vector<1x1x8x288xf32> to vector<8x288xf32>
    %c0_6 = arith.constant 0 : index
    %c2 = arith.constant 2 : index
    %c0_7 = arith.constant 0 : index
    %c0_8 = arith.constant 0 : index
    %4 = vector.load %arg1[%c0_6, %c2, %c0_7, %c0_8] : memref<1x3x8x288xf32, #tpu.memory_space<vmem>>, vector<1x1x8x288xf32>
    %5 = vector.shape_cast %4 : vector<1x1x8x288xf32> to vector<8x288xf32>
    %6 = vector.extract_strided_slice %1 {offsets = [0, 0], sizes = [8, 256], strides = [1, 1]} : vector<8x288xf32> to vector<8x256xf32>
    %7 = vector.extract_strided_slice %3 {offsets = [0, 0], sizes = [8, 256], strides = [1, 1]} : vector<8x288xf32> to vector<8x256xf32>
    %8 = vector.extract_strided_slice %5 {offsets = [0, 0], sizes = [8, 256], strides = [1, 1]} : vector<8x288xf32> to vector<8x256xf32>
    %9 = vector.extract_strided_slice %1 {offsets = [0, 16], sizes = [8, 256], strides = [1, 1]} : vector<8x288xf32> to vector<8x256xf32>
    %10 = vector.extract_strided_slice %3 {offsets = [0, 16], sizes = [8, 256], strides = [1, 1]} : vector<8x288xf32> to vector<8x256xf32>
    %11 = vector.extract_strided_slice %5 {offsets = [0, 16], sizes = [8, 256], strides = [1, 1]} : vector<8x288xf32> to vector<8x256xf32>
    %12 = vector.extract_strided_slice %1 {offsets = [0, 32], sizes = [8, 256], strides = [1, 1]} : vector<8x288xf32> to vector<8x256xf32>
    %13 = vector.extract_strided_slice %3 {offsets = [0, 32], sizes = [8, 256], strides = [1, 1]} : vector<8x288xf32> to vector<8x256xf32>
    %14 = vector.extract_strided_slice %5 {offsets = [0, 32], sizes = [8, 256], strides = [1, 1]} : vector<8x288xf32> to vector<8x256xf32>
    %15 = tpu.concatenate %6, %7, %8, %9, %10, %11, %12, %13, %14 in 0 : vector<8x256xf32>, vector<8x256xf32>, vector<8x256xf32>, vector<8x256xf32>, vector<8x256xf32>, vector<8x256xf32>, vector<8x256xf32>, vector<8x256xf32>, vector<8x256xf32> -> vector<72x256xf32>
    %c0_9 = arith.constant 0 : index
    %c0_10 = arith.constant 0 : index
    %16 = vector.load %arg2[%c0_9, %c0_10] : memref<8x72xf32, #tpu.memory_space<vmem>>, vector<8x72xf32>
    %cst = arith.constant dense<0.000000e+00> : vector<8x256xf32>
    %17 = tpu.matmul %16, %15, %cst {dimension_numbers = #tpu.dot_dimension_numbers<[1], [0], [0], [1], [0, 0, 1, 1], [], []>} : vector<8x72xf32>, vector<72x256xf32>, vector<8x256xf32> -> vector<8x256xf32>
    %c0_11 = arith.constant 0 : index
    %c0_12 = arith.constant 0 : index
    %18 = vector.load %arg3[%c0_11, %c0_12] : memref<8x1xf32, #tpu.memory_space<vmem>>, vector<8x1xf32>
    %19 = vector.broadcast %18 : vector<8x1xf32> to vector<8x256xf32>
    %20 = arith.addf %17, %19 : vector<8x256xf32>
    %cst_13 = arith.constant 0.000000e+00 : f32
    %21 = vector.broadcast %cst_13 : f32 to vector<8x256xf32>
    %22 = arith.maximumf %20, %21 : vector<8x256xf32>
    %c0_14 = arith.constant 0 : index
    %c0_15 = arith.constant 0 : index
    %23 = vector.load %arg4[%c0_14, %c0_15] : memref<256x1024xf32, #tpu.memory_space<vmem>>, vector<256x1024xf32>
    %cst_16 = arith.constant dense<0.000000e+00> : vector<8x1024xf32>
    %24 = tpu.matmul %22, %23, %cst_16 {dimension_numbers = #tpu.dot_dimension_numbers<[1], [0], [0], [1], [0, 0, 1, 1], [], []>} : vector<8x256xf32>, vector<256x1024xf32>, vector<8x1024xf32> -> vector<8x1024xf32>
    %c0_17 = arith.constant 0 : index
    %c0_18 = arith.constant 0 : index
    %25 = vector.load %arg5[%c0_17, %c0_18] : memref<1x128xf32, #tpu.memory_space<vmem>>, vector<1x128xf32>
    %26 = vector.extract_strided_slice %24 {offsets = [0, 0], sizes = [1, 128], strides = [1, 1]} : vector<8x1024xf32> to vector<1x128xf32>
    %27 = arith.addf %25, %26 : vector<1x128xf32>
    %28 = vector.extract_strided_slice %24 {offsets = [1, 128], sizes = [1, 128], strides = [1, 1]} : vector<8x1024xf32> to vector<1x128xf32>
    %29 = arith.addf %27, %28 : vector<1x128xf32>
    %30 = vector.extract_strided_slice %24 {offsets = [2, 256], sizes = [1, 128], strides = [1, 1]} : vector<8x1024xf32> to vector<1x128xf32>
    %31 = arith.addf %29, %30 : vector<1x128xf32>
    %32 = vector.extract_strided_slice %24 {offsets = [3, 384], sizes = [1, 128], strides = [1, 1]} : vector<8x1024xf32> to vector<1x128xf32>
    %33 = arith.addf %31, %32 : vector<1x128xf32>
    %34 = vector.extract_strided_slice %24 {offsets = [4, 512], sizes = [1, 128], strides = [1, 1]} : vector<8x1024xf32> to vector<1x128xf32>
    %35 = arith.addf %33, %34 : vector<1x128xf32>
    %36 = vector.extract_strided_slice %24 {offsets = [5, 640], sizes = [1, 128], strides = [1, 1]} : vector<8x1024xf32> to vector<1x128xf32>
    %37 = arith.addf %35, %36 : vector<1x128xf32>
    %38 = vector.extract_strided_slice %24 {offsets = [6, 768], sizes = [1, 128], strides = [1, 1]} : vector<8x1024xf32> to vector<1x128xf32>
    %39 = arith.addf %37, %38 : vector<1x128xf32>
    %40 = vector.extract_strided_slice %24 {offsets = [7, 896], sizes = [1, 128], strides = [1, 1]} : vector<8x1024xf32> to vector<1x128xf32>
    %41 = arith.addf %39, %40 : vector<1x128xf32>
    %c0_19 = arith.constant 0 : index
    %c0_20 = arith.constant 0 : index
    %c0_21 = arith.constant 0 : index
    %42 = vector.load %arg6[%c0_19, %c0_20, %c0_21] : memref<1x1x128xf32, #tpu.memory_space<vmem>>, vector<1x1x128xf32>
    %43 = vector.shape_cast %42 : vector<1x1x128xf32> to vector<1x128xf32>
    %44 = vector.shape_cast %41 : vector<1x128xf32> to vector<1x1x128xf32>
    tpu.vector_store %arg6[%c0_19, %c0_20, %c0_21], %44 {strides = array<i32>} : memref<1x1x128xf32, #tpu.memory_space<vmem>>, vector<1x1x128xf32>,
    return
  }
  func.func @transform_0(%arg0: i32) -> (i32, i32, i32, i32) {
    %c0_i32 = arith.constant 0 : i32
    %c0_i32_0 = arith.constant 0 : i32
    %c0_i32_1 = arith.constant 0 : i32
    %c0_i32_2 = arith.constant 0 : i32
    return %arg0, %c0_i32, %c0_i32_0, %c0_i32_1 : i32, i32, i32, i32
  }
  func.func @transform_1(%arg0: i32) -> (i32, i32) {
    %c0_i32 = arith.constant 0 : i32
    %c0_i32_0 = arith.constant 0 : i32
    %c0_i32_1 = arith.constant 0 : i32
    return %c0_i32, %c0_i32_0 : i32, i32
  }
  func.func @transform_2(%arg0: i32) -> (i32, i32) {
    %c0_i32 = arith.constant 0 : i32
    %c0_i32_0 = arith.constant 0 : i32
    %c0_i32_1 = arith.constant 0 : i32
    return %c0_i32, %c0_i32_0 : i32, i32
  }
  func.func @transform_3(%arg0: i32) -> (i32, i32) {
    %c0_i32 = arith.constant 0 : i32
    %c0_i32_0 = arith.constant 0 : i32
    %c0_i32_1 = arith.constant 0 : i32
    return %c0_i32, %c0_i32_0 : i32, i32
  }
  func.func @transform_4(%arg0: i32) -> (i32, i32) {
    %c0_i32 = arith.constant 0 : i32
    %c0_i32_0 = arith.constant 0 : i32
    %c0_i32_1 = arith.constant 0 : i32
    return %c0_i32, %c0_i32_0 : i32, i32
  }
  func.func @transform_5(%arg0: i32) -> (i32, i32, i32) {
    %c0_i32 = arith.constant 0 : i32
    %c0_i32_0 = arith.constant 0 : i32
    %c0_i32_1 = arith.constant 0 : i32
    return %arg0, %c0_i32, %c0_i32_0 : i32, i32, i32
  }
}

</mosaic_0001>

<llo_original>
// kernel: pretrain_classifier_forward.1
$region0: #{pretrain_classifier_forward.1}
  #allocation0 [shape = 'u32[]', space=smem, size = 0x4, offset = 0x4, fixed_abs, tag = 'smem constant byte address 0x4 - core index']
  #allocation1 [shape = 'u32[144,128]{1,0:T(1,128)}', space=vmem, size = 0x12000, scoped, tag = 'internal scratch']
  %s0 = inlined_call_operand.vmem [shape: f32[2,3,8,288], index: 0, kind: input, shape index: {}]
  %s1 = inlined_call_operand.vmem [shape: f32[8,72], index: 1, kind: input, shape index: {}]
  %s2 = inlined_call_operand.vmem [shape: f32[8,1], index: 2, kind: input, shape index: {}]
  %s3 = inlined_call_operand.vmem [shape: f32[256,1024], index: 3, kind: input, shape index: {}]
  %s4 = inlined_call_operand.vmem [shape: f32[1,128], index: 4, kind: input, shape index: {}]
  %s5 = inlined_call_operand.hbm [shape: f32[2,1,128], index: 5, kind: output, shape index: {}]
  %s6 = sld [smem:[#allocation0]]
  $region53: #{pretrain_classifier_forward.1} parent=0
    _
  %s8 = ssub.s32 1, %s6
  %s9 = scalar_select 0, %s8, %s6
  $region1: #{pretrain_classifier_forward.1} parent=0
    #allocation2 [shape = 'u8[1024]{0}', space=vmem, size = 0x400, scoped, tag = 'output window, operand 0']
    #allocation3 [shape = 's32[2]{0}', space=sflag, size = 0x8, scoped, tag = 'scoped memory for pretrain_classifier_forward.1']
    %10 = vsyncpa [#allocation3], 0
    %s11 = scalar_lea.sflag [#allocation3], 1
    %12 = vsyncpa %s11, 0
    loop: start=0, step=1, limit=4
    $region2: #{pretrain_classifier_forward.1} parent=1 // loop_pre_header
      _
    $region3: #{pretrain_classifier_forward.1} parent=1 // loop_header
      %s14 = sphi 0, %s18
      %p15 = scmp.ge.s32.totalorder %s14, 4
      %s24 = sphi 0, %s26
      %s27 = sphi 0, %s24
      %s28 = sphi 0, %s27
      %s44 = sphi 0, %s28
      %s48 = sphi 0, %s48
      %s50 = sphi 0, %s48
      %s51 = sphi 0, %s50
      %s65 = sphi 0, %s51
      %s69 = sphi 0, %s69
      %s71 = sphi 0, %s69
      %s72 = sphi 0, %s71
      %s86 = sphi 0, %s72
      %s90 = sphi 0, %s90
      %s92 = sphi 0, %s90
      %s93 = sphi 0, %s92
      %s107 = sphi 0, %s93
      %s111 = sphi 0, %s111
      %s113 = sphi 0, %s111
      %s114 = sphi 0, %s113
      %s128 = sphi 0, %s114
      %s134 = sphi 0, %s136
      %s137 = sphi 0, %s134
      %s138 = sphi 0, %s137
      %s154 = sphi 0, %s138
    $region4: #{pretrain_classifier_forward.1} parent=1 // loop_header_branch
      %17 = sbr.rel (%p15) target = $region8
    $region5: #{pretrain_classifier_forward.1} parent=1 // loop_body
      %s19 = ssub.s32 %s14, 1
      %s20 = ssub.s32 %s14, 2
      %s21 = sadd.s32 %s14, 1
      %s22 = ssub.s32 %s14, %s21
      %p23 = scmp.eq.s32.totalorder %s22, 0
      %s25 = sadd.s32 %s24, 1
      %s26 = scalar_select %p23, %s24, %s25
      %p29 = pneg %p23
      %p30 = scmp.eq.s32.totalorder %s14, 1
      %p31 = por %p29, %p30
      %p32 = scmp.ne.s32.totalorder %s24, %s27
      %p33 = scmp.eq.s32.totalorder %s14, 0
      %p34 = por %p32, %p33
      %p35 = scmp.ne.s32.totalorder %s24, %s27
      %p36 = scmp.eq.s32.totalorder %s19, 1
      %p37 = por %p35, %p36
      %p38 = scmp.ne.s32.totalorder %s27, %s28
      %p39 = scmp.eq.s32.totalorder %s19, 0
      %p40 = por %p38, %p39
      %p41 = scmp.ne.s32.totalorder %s27, %s28
      %p42 = scmp.eq.s32.totalorder %s20, 1
      %p43 = por %p41, %p42
      %p45 = scmp.ne.s32.totalorder %s28, %s44
      %p46 = scmp.eq.s32.totalorder %s20, 0
      %p47 = por %p45, %p46
      %s49 = sadd.s32 %s48, 1
      %p52 = scmp.eq.s32.totalorder %s14, 1
      %p53 = scmp.ne.s32.totalorder %s48, %s50
      %p54 = scmp.eq.s32.totalorder %s14, 0
      %p55 = por %p53, %p54
      %p56 = scmp.ne.s32.totalorder %s48, %s50
      %p57 = scmp.eq.s32.totalorder %s19, 1
      %p58 = por %p56, %p57
      %p59 = scmp.ne.s32.totalorder %s50, %s51
      %p60 = scmp.eq.s32.totalorder %s19, 0
      %p61 = por %p59, %p60
      %p62 = scmp.ne.s32.totalorder %s50, %s51
      %p63 = scmp.eq.s32.totalorder %s20, 1
      %p64 = por %p62, %p63
      %p66 = scmp.ne.s32.totalorder %s51, %s65
      %p67 = scmp.eq.s32.totalorder %s20, 0
      %p68 = por %p66, %p67
      %s70 = sadd.s32 %s69, 1
      %p73 = scmp.eq.s32.totalorder %s14, 1
      %p74 = scmp.ne.s32.totalorder %s69, %s71
      %p75 = scmp.eq.s32.totalorder %s14, 0
      %p76 = por %p74, %p75
      %p77 = scmp.ne.s32.totalorder %s69, %s71
      %p78 = scmp.eq.s32.totalorder %s19, 1
      %p79 = por %p77, %p78
      %p80 = scmp.ne.s32.totalorder %s71, %s72
      %p81 = scmp.eq.s32.totalorder %s19, 0
      %p82 = por %p80, %p81
      %p83 = scmp.ne.s32.totalorder %s71, %s72
      %p84 = scmp.eq.s32.totalorder %s20, 1
      %p85 = por %p83, %p84
      %p87 = scmp.ne.s32.totalorder %s72, %s86
      %p88 = scmp.eq.s32.totalorder %s20, 0
      %p89 = por %p87, %p88
      %s91 = sadd.s32 %s90, 1
      %p94 = scmp.eq.s32.totalorder %s14, 1
      %p95 = scmp.ne.s32.totalorder %s90, %s92
      %p96 = scmp.eq.s32.totalorder %s14, 0
      %p97 = por %p95, %p96
      %p98 = scmp.ne.s32.totalorder %s90, %s92
      %p99 = scmp.eq.s32.totalorder %s19, 1
      %p100 = por %p98, %p99
      %p101 = scmp.ne.s32.totalorder %s92, %s93
      %p102 = scmp.eq.s32.totalorder %s19, 0
      %p103 = por %p101, %p102
      %p104 = scmp.ne.s32.totalorder %s92, %s93
      %p105 = scmp.eq.s32.totalorder %s20, 1
      %p106 = por %p104, %p105
      %p108 = scmp.ne.s32.totalorder %s93, %s107
      %p109 = scmp.eq.s32.totalorder %s20, 0
      %p110 = por %p108, %p109
      %s112 = sadd.s32 %s111, 1
      %p115 = scmp.eq.s32.totalorder %s14, 1
      %p116 = scmp.ne.s32.totalorder %s111, %s113
      %p117 = scmp.eq.s32.totalorder %s14, 0
      %p118 = por %p116, %p117
      %p119 = scmp.ne.s32.totalorder %s111, %s113
      %p120 = scmp.eq.s32.totalorder %s19, 1
      %p121 = por %p119, %p120
      %p122 = scmp.ne.s32.totalorder %s113, %s114
      %p123 = scmp.eq.s32.totalorder %s19, 0
      %p124 = por %p122, %p123
      %p125 = scmp.ne.s32.totalorder %s113, %s114
      %p126 = scmp.eq.s32.totalorder %s20, 1
      %p127 = por %p125, %p126
      %p129 = scmp.ne.s32.totalorder %s114, %s128
      %p130 = scmp.eq.s32.totalorder %s20, 0
      %p131 = por %p129, %p130
      %s132 = ssub.s32 %s14, %s21
      %p133 = scmp.eq.s32.totalorder %s132, 0
      %s135 = sadd.s32 %s134, 1
      %s136 = scalar_select %p133, %s134, %s135
      %p139 = pneg %p133
      %p140 = scmp.eq.s32.totalorder %s14, 1
      %p141 = por %p139, %p140
      %p142 = scmp.ne.s32.totalorder %s134, %s137
      %p143 = scmp.eq.s32.totalorder %s14, 0
      %p144 = por %p142, %p143
      %p145 = scmp.ne.s32.totalorder %s134, %s137
      %p146 = scmp.eq.s32.totalorder %s19, 1
      %p147 = por %p145, %p146
      %p148 = scmp.ne.s32.totalorder %s137, %s138
      %p149 = scmp.eq.s32.totalorder %s19, 0
      %p150 = por %p148, %p149
      %p151 = scmp.ne.s32.totalorder %s137, %s138
      %p152 = scmp.eq.s32.totalorder %s20, 1
      %p153 = por %p151, %p152
      %p155 = scmp.ne.s32.totalorder %s138, %s154
      %p156 = scmp.eq.s32.totalorder %s20, 0
      %p157 = por %p155, %p156
      %p158 = scmp.le.s32.totalorder 1, %s14
      %p159 = scmp.lt.s32.totalorder %s14, 3
      %p160 = pnand %p158, %p159
      %p161 = pneg %p160
      // Predicated region
      $region9: #{pretrain_classifier_forward.1} parent=5 // pred_check
        _
      $region10: #{pretrain_classifier_forward.1} parent=5 // pred_check_branch
        %163 = sbr.rel (%p160) target = $region12
      $region11: #{pretrain_classifier_forward.1} parent=5 // pred_region
        %s164 = ssub.s32 %s14, 1
        // Predicated region
        $region13: #{pretrain_classifier_forward.1} parent=11 // pred_check
          %p165 = pneg %p61
        $region14: #{pretrain_classifier_forward.1} parent=11 // pred_check_branch
          %167 = sbr.rel (%p165) target = $region16
        $region15: #{pretrain_classifier_forward.1} parent=11 // pred_region
          _
        $region16: #{pretrain_classifier_forward.1} parent=11 // pred_fallthru
          _
        // Predicated region
        $region17: #{pretrain_classifier_forward.1} parent=11 // pred_check
          %p168 = pneg %p82
        $region18: #{pretrain_classifier_forward.1} parent=11 // pred_check_branch
          %170 = sbr.rel (%p168) target = $region20
        $region19: #{pretrain_classifier_forward.1} parent=11 // pred_region
          _
        $region20: #{pretrain_classifier_forward.1} parent=11 // pred_fallthru
          _
        // Predicated region
        $region21: #{pretrain_classifier_forward.1} parent=11 // pred_check
          %p171 = pneg %p103
        $region22: #{pretrain_classifier_forward.1} parent=11 // pred_check_branch
          %173 = sbr.rel (%p171) target = $region24
        $region23: #{pretrain_classifier_forward.1} parent=11 // pred_region
          _
        $region24: #{pretrain_classifier_forward.1} parent=11 // pred_fallthru
          _
        // Predicated region
        $region25: #{pretrain_classifier_forward.1} parent=11 // pred_check
          %p174 = pneg %p124
        $region26: #{pretrain_classifier_forward.1} parent=11 // pred_check_branch
          %176 = sbr.rel (%p174) target = $region28
        $region27: #{pretrain_classifier_forward.1} parent=11 // pred_region
          _
        $region28: #{pretrain_classifier_forward.1} parent=11 // pred_fallthru
          _
      $region12: #{pretrain_classifier_forward.1} parent=5 // pred_fallthru
        _
      %p177 = scmp.lt.s32.totalorder %s14, 2
      // Predicated region
      $region29: #{pretrain_classifier_forward.1} parent=5 // pred_check
        %p178 = pneg %p177
      $region30: #{pretrain_classifier_forward.1} parent=5 // pred_check_branch
        %180 = sbr.rel (%p178) target = $region32
      $region31: #{pretrain_classifier_forward.1} parent=5 // pred_region
        // Predicated region
        $region33: #{pretrain_classifier_forward.1} parent=31 // pred_check
          %p181 = pneg %p34
        $region34: #{pretrain_classifier_forward.1} parent=31 // pred_check_branch
          %183 = sbr.rel (%p181) target = $region36
        $region35: #{pretrain_classifier_forward.1} parent=31 // pred_region
          %p184 = scmp.lt.s32.totalorder %s14, 1
          %s185 = scalar_select %p184, %s14, 1
          %s186 = smul.addr %s185, 9
          %s187 = smul.addr %s186, 8
          %s188 = scalar_lea.vmem %s0, %s187
        $region36: #{pretrain_classifier_forward.1} parent=31 // pred_fallthru
          _
      $region32: #{pretrain_classifier_forward.1} parent=5 // pred_fallthru
        _
      %p189 = scmp.le.s32.totalorder 1, %s14
      %p190 = scmp.lt.s32.totalorder %s14, 3
      %p191 = pnand %p189, %p190
      %p192 = pneg %p191
      // Predicated region
      $region37: #{pretrain_classifier_forward.1} parent=5 // pred_check
        _
      $region38: #{pretrain_classifier_forward.1} parent=5 // pred_check_branch
        %194 = sbr.rel (%p191) target = $region40
      $region39: #{pretrain_classifier_forward.1} parent=5 // pred_region
        %s195 = ssub.s32 %s14, 1
        %p196 = scmp.lt.s32.totalorder %s19, 1
        %s197 = scalar_select %p196, %s19, 1
        %s198 = smul.addr %s197, 9
        %s199 = smul.addr %s198, 8
        %s200 = scalar_lea.vmem %s0, %s199
        %p201 = pneg %p40
        %p202 = pneg %p37
        %p203 = pneg %p61
        %p204 = pneg %p58
        %p205 = pneg %p82
        %p206 = pneg %p79
        %p207 = pneg %p103
        %p208 = pneg %p100
        %p209 = pneg %p124
        %p210 = pneg %p121
        %p211 = pneg %p150
        %p212 = pneg %p147
        %s213 = sand.u32 %s137, 1
        %s214 = scalar_lea.sflag [#allocation3], %s213
        %s215 = sand.u32 %s137, 1
        %s216 = scalar_lea.vmem [#allocation2], %s215
        %p217 = scmp.lt.s32.totalorder %s19, 1
        %s218 = scalar_select %p217, %s19, 1
        %s219 = smul.addr %s218, 9
        %s220 = smul.addr %s219, 8
        %s221 = scalar_lea.vmem %s0, %s220
        %v222 = vld [vmem:[%s221] sm:$0xff]
        %v223 = vld [vmem:[%s221 + $0x8] sm:$0xff]
        %v224 = vld [vmem:[%s221 + $0x10] sm:$0xff]
        %s225 = scalar_lea.vmem %s221, 24
        %v226 = vld [vmem:[%s225] sm:$0xff]
        %v227 = vld [vmem:[%s225 + $0x8] sm:$0xff]
        %v228 = vld [vmem:[%s225 + $0x10] sm:$0xff]
        %s229 = scalar_lea.vmem %s221, 48
        %v230 = vld [vmem:[%s229] sm:$0xff]
        %v231 = vld [vmem:[%s229 + $0x8] sm:$0xff]
        %v232 = vld [vmem:[%s229 + $0x10] sm:$0xff]
        %236 = vrot.lane.b32.xlu0 %v222, 112
        %v237 = vpop.permute.xlu0 %236
        %238 = vrot.lane.b32.xlu0 %v223, 112
        %v239 = vpop.permute.xlu0 %238
        %240 = vrot.lane.b32.xlu0 %v224, 112
        %v241 = vpop.permute.xlu0 %240
        %vm242 = vcmask 916480
        %v243 = vsel %vm242, %v237, %v239
        %v244 = vsel %vm242, %v239, %v241
        %250 = vrot.lane.b32.xlu0 %v226, 112
        %v251 = vpop.permute.xlu0 %250
        %252 = vrot.lane.b32.xlu0 %v227, 112
        %v253 = vpop.permute.xlu0 %252
        %254 = vrot.lane.b32.xlu0 %v228, 112
        %v255 = vpop.permute.xlu0 %254
        %v256 = vsel %vm242, %v251, %v253
        %v257 = vsel %vm242, %v253, %v255
        %263 = vrot.lane.b32.xlu0 %v230, 112
        %v264 = vpop.permute.xlu0 %263
        %265 = vrot.lane.b32.xlu0 %v231, 112
        %v266 = vpop.permute.xlu0 %265
        %267 = vrot.lane.b32.xlu0 %v232, 112
        %v268 = vpop.permute.xlu0 %267
        %v269 = vsel %vm242, %v264, %v266
        %v270 = vsel %vm242, %v266, %v268
        %273 = vrot.lane.b32.xlu0 %v222, 96
        %v274 = vpop.permute.xlu0 %273
        %275 = vrot.lane.b32.xlu0 %v223, 96
        %v276 = vpop.permute.xlu0 %275
        %277 = vrot.lane.b32.xlu0 %v224, 96
        %v278 = vpop.permute.xlu0 %277
        %vm279 = vcmask 785408
        %v280 = vsel %vm279, %v274, %v276
        %v281 = vsel %vm279, %v276, %v278
        %284 = vrot.lane.b32.xlu0 %v226, 96
        %v285 = vpop.permute.xlu0 %284
        %286 = vrot.lane.b32.xlu0 %v227, 96
        %v287 = vpop.permute.xlu0 %286
        %288 = vrot.lane.b32.xlu0 %v228, 96
        %v289 = vpop.permute.xlu0 %288
        %v290 = vsel %vm279, %v285, %v287
        %v291 = vsel %vm279, %v287, %v289
        %294 = vrot.lane.b32.xlu0 %v230, 96
        %v295 = vpop.permute.xlu0 %294
        %296 = vrot.lane.b32.xlu0 %v231, 96
        %v297 = vpop.permute.xlu0 %296
        %298 = vrot.lane.b32.xlu0 %v232, 96
        %v299 = vpop.permute.xlu0 %298
        %v300 = vsel %vm279, %v295, %v297
        %v301 = vsel %vm279, %v297, %v299
        %v304 = vld [vmem:[%s1] sm:$0xff]
        %v305 = vld [vmem:[%s2] sm:$0xff]
        %307 = vset.pattern.permute.xlu0 0
        %308 = vperm.xlu0 %307, %v305
        %v309 = vpop.permute.xlu0 %308
        %vm311 = vcmask 588800
        %v313 = vsel %vm311, %v304, 0
        %315 = vmatprep.subr.mxu0 %v223
        %316 = vmatpush1.msra.mxu0 %v222
        %317 = vmatprep.subr.mxu0 %v227
        %318 = vmatpush1.msra.mxu0 %v226
        %319 = vmatprep.subr.mxu0 %v231
        %320 = vmatpush1.msra.mxu0 %v230
        %321 = vmatprep.subr.mxu0 %v244
        %322 = vmatpush1.msra.mxu0 %v243
        %323 = vmatprep.subr.mxu0 %v257
        %324 = vmatpush1.msra.mxu0 %v256
        %325 = vmatprep.subr.mxu0 %v270
        %326 = vmatpush1.msra.mxu0 %v269
        %327 = vmatprep.subr.mxu0 %v281
        %328 = vmatpush1.msra.mxu0 %v280
        %329 = vmatprep.subr.mxu0 %v291
        %330 = vmatpush1.msra.mxu0 %v290
        %331 = vmatprep.subr.mxu0 %v301
        %332 = vmatpush1.msra.mxu0 %v300
        %333 = vmatprep.subr.mxu0 0.0
        %334 = vmatpush1.msra.mxu0 0.0
        %335 = vmatprep.subr.mxu0 0.0
        %336 = vmatpush1.msra.mxu0 0.0
        %337 = vmatprep.subr.mxu0 0.0
        %338 = vmatpush1.msra.mxu0 0.0
        %339 = vmatprep.subr.mxu0 0.0
        %340 = vmatpush1.msra.mxu0 0.0
        %341 = vmatprep.subr.mxu0 0.0
        %342 = vmatpush1.msra.mxu0 0.0
        %343 = vmatprep.subr.mxu0 0.0
        %344 = vmatpush1.msra.mxu0 0.0
        %345 = vmatprep.subr.mxu0 0.0
        %346 = vmatpush1.msra.mxu0 0.0
        %347 = vmatprep.subr.mxu0 0.0
        %348 = vmatpush1.msra.mxu0 0.0
        %349 = vmatprep.subr.mxu0 0.0
        %350 = vmatpush1.msra.mxu0 0.0
        %351 = vmatprep.subr.mxu0 0.0
        %352 = vmatpush1.msra.mxu0 0.0
        %353 = vmatprep.subr.mxu0 0.0
        %354 = vmatpush1.msra.mxu0 0.0
        %355 = vmatprep.subr.mxu0 0.0
        %356 = vmatpush1.msra.mxu0 0.0
        %357 = vmatprep.subr.mxu0 0.0
        %358 = vmatpush1.msra.mxu0 0.0
        %359 = vmatprep.subr.mxu0 0.0
        %360 = vmatpush1.msra.mxu0 0.0
        %361 = vmatprep.subr.mxu0 0.0
        %362 = vmatpush1.msra.mxu0 0.0
        %363 = vmatprep.subr.mxu0 0.0
        %364 = vmatpush1.msra.mxu0 0.0
        %365 = vmatprep.subr.mxu0 0.0
        %366 = vmatpush1.msra.mxu0 0.0
        %367 = vmatprep.subr.mxu0 0.0
        %368 = vmatpush1.msra.mxu0 0.0
        %369 = vmatprep.subr.mxu0 0.0
        %370 = vmatpush1.msra.mxu0 0.0
        %371 = vmatprep.subr.mxu0 0.0
        %372 = vmatpush1.msra.mxu0 0.0
        %373 = vmatprep.subr.mxu0 0.0
        %374 = vmatpush1.msra.mxu0 0.0
        %375 = vmatprep.subr.mxu0 0.0
        %376 = vmatpush1.msra.mxu0 0.0
        %377 = vmatprep.subr.mxu0 0.0
        %378 = vmatpush1.msra.mxu0 0.0
        %379 = vmatprep.mubr.f32.mxu0 0.0
        %380 = vmatmul.mubr.f32.gmra.mrb[0].mxu0 %v313
        %v381 = vpop.f32.mrb[0].mxu0
        %v382 = vadd.f32 %v309, %v381
        %v383 = vpop.f32.mrb[0].mxu0
        %v384 = vadd.f32 %v309, %v383
        %385 = vdwg.mxu0
        %v386 = vmax.f32 %v382, 0.0
        %v387 = vmax.f32 %v384, 0.0
        %v388 = vld [vmem:[%s3] sm:$0xff]
        %v389 = vld [vmem:[%s3 + $0x8] sm:$0xff]
        %v390 = vld [vmem:[%s3 + $0x10] sm:$0xff]
        %v391 = vld [vmem:[%s3 + $0x18] sm:$0xff]
        %v392 = vld [vmem:[%s3 + $0x20] sm:$0xff]
        %v393 = vld [vmem:[%s3 + $0x28] sm:$0xff]
        %v394 = vld [vmem:[%s3 + $0x30] sm:$0xff]
        %v395 = vld [vmem:[%s3 + $0x38] sm:$0xff]
        %v396 = vld [vmem:[%s3 + $0x40] sm:$0xff]
        %v397 = vld [vmem:[%s3 + $0x48] sm:$0xff]
        %v398 = vld [vmem:[%s3 + $0x50] sm:$0xff]
        %v399 = vld [vmem:[%s3 + $0x58] sm:$0xff]
        %v400 = vld [vmem:[%s3 + $0x60] sm:$0xff]
        %v401 = vld [vmem:[%s3 + $0x68] sm:$0xff]
        %v402 = vld [vmem:[%s3 + $0x70] sm:$0xff]
        %v403 = vld [vmem:[%s3 + $0x78] sm:$0xff]
        %v404 = vld [vmem:[%s3 + $0x80] sm:$0xff]
        %v405 = vld [vmem:[%s3 + $0x88] sm:$0xff]
        %v406 = vld [vmem:[%s3 + $0x90] sm:$0xff]
        %v407 = vld [vmem:[%s3 + $0x98] sm:$0xff]
        %v408 = vld [vmem:[%s3 + $0xa0] sm:$0xff]
        %v409 = vld [vmem:[%s3 + $0xa8] sm:$0xff]
        %v410 = vld [vmem:[%s3 + $0xb0] sm:$0xff]
        %v411 = vld [vmem:[%s3 + $0xb8] sm:$0xff]
        %v412 = vld [vmem:[%s3 + $0xc0] sm:$0xff]
        %v413 = vld [vmem:[%s3 + $0xc8] sm:$0xff]
        %v414 = vld [vmem:[%s3 + $0xd0] sm:$0xff]
        %v415 = vld [vmem:[%s3 + $0xd8] sm:$0xff]
        %v416 = vld [vmem:[%s3 + $0xe0] sm:$0xff]
        %v417 = vld [vmem:[%s3 + $0xe8] sm:$0xff]
        %v418 = vld [vmem:[%s3 + $0xf0] sm:$0xff]
        %v419 = vld [vmem:[%s3 + $0xf8] sm:$0xff]
        %v420 = vld [vmem:[%s3 + $0x100] sm:$0xff]
        %v421 = vld [vmem:[%s3 + $0x108] sm:$0xff]
        %v422 = vld [vmem:[%s3 + $0x110] sm:$0xff]
        %v423 = vld [vmem:[%s3 + $0x118] sm:$0xff]
        %v424 = vld [vmem:[%s3 + $0x120] sm:$0xff]
        %v425 = vld [vmem:[%s3 + $0x128] sm:$0xff]
        %v426 = vld [vmem:[%s3 + $0x130] sm:$0xff]
        %v427 = vld [vmem:[%s3 + $0x138] sm:$0xff]
        %v428 = vld [vmem:[%s3 + $0x140] sm:$0xff]
        %v429 = vld [vmem:[%s3 + $0x148] sm:$0xff]
        %v430 = vld [vmem:[%s3 + $0x150] sm:$0xff]
        %v431 = vld [vmem:[%s3 + $0x158] sm:$0xff]
        %v432 = vld [vmem:[%s3 + $0x160] sm:$0xff]
        %v433 = vld [vmem:[%s3 + $0x168] sm:$0xff]
        %v434 = vld [vmem:[%s3 + $0x170] sm:$0xff]
        %v435 = vld [vmem:[%s3 + $0x178] sm:$0xff]
        %v436 = vld [vmem:[%s3 + $0x180] sm:$0xff]
        %v437 = vld [vmem:[%s3 + $0x188] sm:$0xff]
        %v438 = vld [vmem:[%s3 + $0x190] sm:$0xff]
        %v439 = vld [vmem:[%s3 + $0x198] sm:$0xff]
        %v440 = vld [vmem:[%s3 + $0x1a0] sm:$0xff]
        %v441 = vld [vmem:[%s3 + $0x1a8] sm:$0xff]
        %v442 = vld [vmem:[%s3 + $0x1b0] sm:$0xff]
        %v443 = vld [vmem:[%s3 + $0x1b8] sm:$0xff]
        %v444 = vld [vmem:[%s3 + $0x1c0] sm:$0xff]
        %v445 = vld [vmem:[%s3 + $0x1c8] sm:$0xff]
        %v446 = vld [vmem:[%s3 + $0x1d0] sm:$0xff]
        %v447 = vld [vmem:[%s3 + $0x1d8] sm:$0xff]
        %v448 = vld [vmem:[%s3 + $0x1e0] sm:$0xff]
        %v449 = vld [vmem:[%s3 + $0x1e8] sm:$0xff]
        %v450 = vld [vmem:[%s3 + $0x1f0] sm:$0xff]
        %v451 = vld [vmem:[%s3 + $0x1f8] sm:$0xff]
        %v452 = vld [vmem:[%s3 + $0x200] sm:$0xff]
        %v453 = vld [vmem:[%s3 + $0x208] sm:$0xff]
        %v454 = vld [vmem:[%s3 + $0x210] sm:$0xff]
        %v455 = vld [vmem:[%s3 + $0x218] sm:$0xff]
        %v456 = vld [vmem:[%s3 + $0x220] sm:$0xff]
        %v457 = vld [vmem:[%s3 + $0x228] sm:$0xff]
        %v458 = vld [vmem:[%s3 + $0x230] sm:$0xff]
        %v459 = vld [vmem:[%s3 + $0x238] sm:$0xff]
        %v460 = vld [vmem:[%s3 + $0x240] sm:$0xff]
        %v461 = vld [vmem:[%s3 + $0x248] sm:$0xff]
        %v462 = vld [vmem:[%s3 + $0x250] sm:$0xff]
        %v463 = vld [vmem:[%s3 + $0x258] sm:$0xff]
        %v464 = vld [vmem:[%s3 + $0x260] sm:$0xff]
        %v465 = vld [vmem:[%s3 + $0x268] sm:$0xff]
        %v466 = vld [vmem:[%s3 + $0x270] sm:$0xff]
        %v467 = vld [vmem:[%s3 + $0x278] sm:$0xff]
        %v468 = vld [vmem:[%s3 + $0x280] sm:$0xff]
        %v469 = vld [vmem:[%s3 + $0x288] sm:$0xff]
        %v470 = vld [vmem:[%s3 + $0x290] sm:$0xff]
        %v471 = vld [vmem:[%s3 + $0x298] sm:$0xff]
        %v472 = vld [vmem:[%s3 + $0x2a0] sm:$0xff]
        %v473 = vld [vmem:[%s3 + $0x2a8] sm:$0xff]
        %v474 = vld [vmem:[%s3 + $0x2b0] sm:$0xff]
        %v475 = vld [vmem:[%s3 + $0x2b8] sm:$0xff]
        %v476 = vld [vmem:[%s3 + $0x2c0] sm:$0xff]
        %v477 = vld [vmem:[%s3 + $0x2c8] sm:$0xff]
        %v478 = vld [vmem:[%s3 + $0x2d0] sm:$0xff]
        %v479 = vld [vmem:[%s3 + $0x2d8] sm:$0xff]
        %v480 = vld [vmem:[%s3 + $0x2e0] sm:$0xff]
        %v481 = vld [vmem:[%s3 + $0x2e8] sm:$0xff]
        %v482 = vld [vmem:[%s3 + $0x2f0] sm:$0xff]
        %v483 = vld [vmem:[%s3 + $0x2f8] sm:$0xff]
        %v484 = vld [vmem:[%s3 + $0x300] sm:$0xff]
        %v485 = vld [vmem:[%s3 + $0x308] sm:$0xff]
        %v486 = vld [vmem:[%s3 + $0x310] sm:$0xff]
        %v487 = vld [vmem:[%s3 + $0x318] sm:$0xff]
        %v488 = vld [vmem:[%s3 + $0x320] sm:$0xff]
        %v489 = vld [vmem:[%s3 + $0x328] sm:$0xff]
        %v490 = vld [vmem:[%s3 + $0x330] sm:$0xff]
        %v491 = vld [vmem:[%s3 + $0x338] sm:$0xff]
        %v492 = vld [vmem:[%s3 + $0x340] sm:$0xff]
        %v493 = vld [vmem:[%s3 + $0x348] sm:$0xff]
        %v494 = vld [vmem:[%s3 + $0x350] sm:$0xff]
        %v495 = vld [vmem:[%s3 + $0x358] sm:$0xff]
        %v496 = vld [vmem:[%s3 + $0x360] sm:$0xff]
        %v497 = vld [vmem:[%s3 + $0x368] sm:$0xff]
        %v498 = vld [vmem:[%s3 + $0x370] sm:$0xff]
        %v499 = vld [vmem:[%s3 + $0x378] sm:$0xff]
        %v500 = vld [vmem:[%s3 + $0x380] sm:$0xff]
        %v501 = vld [vmem:[%s3 + $0x388] sm:$0xff]
        %v502 = vld [vmem:[%s3 + $0x390] sm:$0xff]
        %v503 = vld [vmem:[%s3 + $0x398] sm:$0xff]
        %v504 = vld [vmem:[%s3 + $0x3a0] sm:$0xff]
        %v505 = vld [vmem:[%s3 + $0x3a8] sm:$0xff]
        %v506 = vld [vmem:[%s3 + $0x3b0] sm:$0xff]
        %v507 = vld [vmem:[%s3 + $0x3b8] sm:$0xff]
        %v508 = vld [vmem:[%s3 + $0x3c0] sm:$0xff]
        %v509 = vld [vmem:[%s3 + $0x3c8] sm:$0xff]
        %v510 = vld [vmem:[%s3 + $0x3d0] sm:$0xff]
        %v511 = vld [vmem:[%s3 + $0x3d8] sm:$0xff]
        %v512 = vld [vmem:[%s3 + $0x3e0] sm:$0xff]
        %v513 = vld [vmem:[%s3 + $0x3e8] sm:$0xff]
        %v514 = vld [vmem:[%s3 + $0x3f0] sm:$0xff]
        %v515 = vld [vmem:[%s3 + $0x3f8] sm:$0xff]
        %v516 = vld [vmem:[%s3 + $0x400] sm:$0xff]
        %v517 = vld [vmem:[%s3 + $0x408] sm:$0xff]
        %v518 = vld [vmem:[%s3 + $0x410] sm:$0xff]
        %v519 = vld [vmem:[%s3 + $0x418] sm:$0xff]
        %v520 = vld [vmem:[%s3 + $0x420] sm:$0xff]
        %v521 = vld [vmem:[%s3 + $0x428] sm:$0xff]
        %v522 = vld [vmem:[%s3 + $0x430] sm:$0xff]
        %v523 = vld [vmem:[%s3 + $0x438] sm:$0xff]
        %v524 = vld [vmem:[%s3 + $0x440] sm:$0xff]
        %v525 = vld [vmem:[%s3 + $0x448] sm:$0xff]
        %v526 = vld [vmem:[%s3 + $0x450] sm:$0xff]
        %v527 = vld [vmem:[%s3 + $0x458] sm:$0xff]
        %v528 = vld [vmem:[%s3 + $0x460] sm:$0xff]
        %v529 = vld [vmem:[%s3 + $0x468] sm:$0xff]
        %v530 = vld [vmem:[%s3 + $0x470] sm:$0xff]
        %v531 = vld [vmem:[%s3 + $0x478] sm:$0xff]
        %v532 = vld [vmem:[%s3 + $0x480] sm:$0xff]
        %v533 = vld [vmem:[%s3 + $0x488] sm:$0xff]
        %v534 = vld [vmem:[%s3 + $0x490] sm:$0xff]
        %v535 = vld [vmem:[%s3 + $0x498] sm:$0xff]
        %v536 = vld [vmem:[%s3 + $0x4a0] sm:$0xff]
        %v537 = vld [vmem:[%s3 + $0x4a8] sm:$0xff]
        %v538 = vld [vmem:[%s3 + $0x4b0] sm:$0xff]
        %v539 = vld [vmem:[%s3 + $0x4b8] sm:$0xff]
        %v540 = vld [vmem:[%s3 + $0x4c0] sm:$0xff]
        %v541 = vld [vmem:[%s3 + $0x4c8] sm:$0xff]
        %v542 = vld [vmem:[%s3 + $0x4d0] sm:$0xff]
        %v543 = vld [vmem:[%s3 + $0x4d8] sm:$0xff]
        %v544 = vld [vmem:[%s3 + $0x4e0] sm:$0xff]
        %v545 = vld [vmem:[%s3 + $0x4e8] sm:$0xff]
        %v546 = vld [vmem:[%s3 + $0x4f0] sm:$0xff]
        %v547 = vld [vmem:[%s3 + $0x4f8] sm:$0xff]
        %v548 = vld [vmem:[%s3 + $0x500] sm:$0xff]
        %v549 = vld [vmem:[%s3 + $0x508] sm:$0xff]
        %v550 = vld [vmem:[%s3 + $0x510] sm:$0xff]
        %v551 = vld [vmem:[%s3 + $0x518] sm:$0xff]
        %v552 = vld [vmem:[%s3 + $0x520] sm:$0xff]
        %v553 = vld [vmem:[%s3 + $0x528] sm:$0xff]
        %v554 = vld [vmem:[%s3 + $0x530] sm:$0xff]
        %v555 = vld [vmem:[%s3 + $0x538] sm:$0xff]
        %v556 = vld [vmem:[%s3 + $0x540] sm:$0xff]
        %v557 = vld [vmem:[%s3 + $0x548] sm:$0xff]
        %v558 = vld [vmem:[%s3 + $0x550] sm:$0xff]
        %v559 = vld [vmem:[%s3 + $0x558] sm:$0xff]
        %v560 = vld [vmem:[%s3 + $0x560] sm:$0xff]
        %v561 = vld [vmem:[%s3 + $0x568] sm:$0xff]
        %v562 = vld [vmem:[%s3 + $0x570] sm:$0xff]
        %v563 = vld [vmem:[%s3 + $0x578] sm:$0xff]
        %v564 = vld [vmem:[%s3 + $0x580] sm:$0xff]
        %v565 = vld [vmem:[%s3 + $0x588] sm:$0xff]
        %v566 = vld [vmem:[%s3 + $0x590] sm:$0xff]
        %v567 = vld [vmem:[%s3 + $0x598] sm:$0xff]
        %v568 = vld [vmem:[%s3 + $0x5a0] sm:$0xff]
        %v569 = vld [vmem:[%s3 + $0x5a8] sm:$0xff]
        %v570 = vld [vmem:[%s3 + $0x5b0] sm:$0xff]
        %v571 = vld [vmem:[%s3 + $0x5b8] sm:$0xff]
        %v572 = vld [vmem:[%s3 + $0x5c0] sm:$0xff]
        %v573 = vld [vmem:[%s3 + $0x5c8] sm:$0xff]
        %v574 = vld [vmem:[%s3 + $0x5d0] sm:$0xff]
        %v575 = vld [vmem:[%s3 + $0x5d8] sm:$0xff]
        %v576 = vld [vmem:[%s3 + $0x5e0] sm:$0xff]
        %v577 = vld [vmem:[%s3 + $0x5e8] sm:$0xff]
        %v578 = vld [vmem:[%s3 + $0x5f0] sm:$0xff]
        %v579 = vld [vmem:[%s3 + $0x5f8] sm:$0xff]
        %v580 = vld [vmem:[%s3 + $0x600] sm:$0xff]
        %v581 = vld [vmem:[%s3 + $0x608] sm:$0xff]
        %v582 = vld [vmem:[%s3 + $0x610] sm:$0xff]
        %v583 = vld [vmem:[%s3 + $0x618] sm:$0xff]
        %v584 = vld [vmem:[%s3 + $0x620] sm:$0xff]
        %v585 = vld [vmem:[%s3 + $0x628] sm:$0xff]
        %v586 = vld [vmem:[%s3 + $0x630] sm:$0xff]
        %v587 = vld [vmem:[%s3 + $0x638] sm:$0xff]
        %v588 = vld [vmem:[%s3 + $0x640] sm:$0xff]
        %v589 = vld [vmem:[%s3 + $0x648] sm:$0xff]
        %v590 = vld [vmem:[%s3 + $0x650] sm:$0xff]
        %v591 = vld [vmem:[%s3 + $0x658] sm:$0xff]
        %v592 = vld [vmem:[%s3 + $0x660] sm:$0xff]
        %v593 = vld [vmem:[%s3 + $0x668] sm:$0xff]
        %v594 = vld [vmem:[%s3 + $0x670] sm:$0xff]
        %v595 = vld [vmem:[%s3 + $0x678] sm:$0xff]
        %v596 = vld [vmem:[%s3 + $0x680] sm:$0xff]
        %v597 = vld [vmem:[%s3 + $0x688] sm:$0xff]
        %v598 = vld [vmem:[%s3 + $0x690] sm:$0xff]
        %v599 = vld [vmem:[%s3 + $0x698] sm:$0xff]
        %v600 = vld [vmem:[%s3 + $0x6a0] sm:$0xff]
        %v601 = vld [vmem:[%s3 + $0x6a8] sm:$0xff]
        %v602 = vld [vmem:[%s3 + $0x6b0] sm:$0xff]
        %v603 = vld [vmem:[%s3 + $0x6b8] sm:$0xff]
        %v604 = vld [vmem:[%s3 + $0x6c0] sm:$0xff]
        %v605 = vld [vmem:[%s3 + $0x6c8] sm:$0xff]
        %v606 = vld [vmem:[%s3 + $0x6d0] sm:$0xff]
        %v607 = vld [vmem:[%s3 + $0x6d8] sm:$0xff]
        %v608 = vld [vmem:[%s3 + $0x6e0] sm:$0xff]
        %v609 = vld [vmem:[%s3 + $0x6e8] sm:$0xff]
        %v610 = vld [vmem:[%s3 + $0x6f0] sm:$0xff]
        %v611 = vld [vmem:[%s3 + $0x6f8] sm:$0xff]
        %v612 = vld [vmem:[%s3 + $0x700] sm:$0xff]
        %v613 = vld [vmem:[%s3 + $0x708] sm:$0xff]
        %v614 = vld [vmem:[%s3 + $0x710] sm:$0xff]
        %v615 = vld [vmem:[%s3 + $0x718] sm:$0xff]
        %v616 = vld [vmem:[%s3 + $0x720] sm:$0xff]
        %v617 = vld [vmem:[%s3 + $0x728] sm:$0xff]
        %v618 = vld [vmem:[%s3 + $0x730] sm:$0xff]
        %v619 = vld [vmem:[%s3 + $0x738] sm:$0xff]
        %v620 = vld [vmem:[%s3 + $0x740] sm:$0xff]
        %v621 = vld [vmem:[%s3 + $0x748] sm:$0xff]
        %v622 = vld [vmem:[%s3 + $0x750] sm:$0xff]
        %v623 = vld [vmem:[%s3 + $0x758] sm:$0xff]
        %v624 = vld [vmem:[%s3 + $0x760] sm:$0xff]
        %v625 = vld [vmem:[%s3 + $0x768] sm:$0xff]
        %v626 = vld [vmem:[%s3 + $0x770] sm:$0xff]
        %v627 = vld [vmem:[%s3 + $0x778] sm:$0xff]
        %v628 = vld [vmem:[%s3 + $0x780] sm:$0xff]
        %v629 = vld [vmem:[%s3 + $0x788] sm:$0xff]
        %v630 = vld [vmem:[%s3 + $0x790] sm:$0xff]
        %v631 = vld [vmem:[%s3 + $0x798] sm:$0xff]
        %v632 = vld [vmem:[%s3 + $0x7a0] sm:$0xff]
        %v633 = vld [vmem:[%s3 + $0x7a8] sm:$0xff]
        %v634 = vld [vmem:[%s3 + $0x7b0] sm:$0xff]
        %v635 = vld [vmem:[%s3 + $0x7b8] sm:$0xff]
        %v636 = vld [vmem:[%s3 + $0x7c0] sm:$0xff]
        %v637 = vld [vmem:[%s3 + $0x7c8] sm:$0xff]
        %v638 = vld [vmem:[%s3 + $0x7d0] sm:$0xff]
        %v639 = vld [vmem:[%s3 + $0x7d8] sm:$0xff]
        %v640 = vld [vmem:[%s3 + $0x7e0] sm:$0xff]
        %v641 = vld [vmem:[%s3 + $0x7e8] sm:$0xff]
        %v642 = vld [vmem:[%s3 + $0x7f0] sm:$0xff]
        %v643 = vld [vmem:[%s3 + $0x7f8] sm:$0xff]
        %644 = vmatprep.subr.mxu0 %v389
        %645 = vmatpush1.msra.mxu0 %v388
        %646 = vmatprep.subr.mxu0 %v397
        %647 = vmatpush1.msra.mxu0 %v396
        %648 = vmatprep.subr.mxu0 %v405
        %649 = vmatpush1.msra.mxu0 %v404
        %650 = vmatprep.subr.mxu0 %v413
        %651 = vmatpush1.msra.mxu0 %v412
        %652 = vmatprep.subr.mxu0 %v421
        %653 = vmatpush1.msra.mxu0 %v420
        %654 = vmatprep.subr.mxu0 %v429
        %655 = vmatpush1.msra.mxu0 %v428
        %656 = vmatprep.subr.mxu0 %v437
        %657 = vmatpush1.msra.mxu0 %v436
        %658 = vmatprep.subr.mxu0 %v445
        %659 = vmatpush1.msra.mxu0 %v444
        %660 = vmatprep.subr.mxu0 %v453
        %661 = vmatpush1.msra.mxu0 %v452
        %662 = vmatprep.subr.mxu0 %v461
        %663 = vmatpush1.msra.mxu0 %v460
        %664 = vmatprep.subr.mxu0 %v469
        %665 = vmatpush1.msra.mxu0 %v468
        %666 = vmatprep.subr.mxu0 %v477
        %667 = vmatpush1.msra.mxu0 %v476
        %668 = vmatprep.subr.mxu0 %v485
        %669 = vmatpush1.msra.mxu0 %v484
        %670 = vmatprep.subr.mxu0 %v493
        %671 = vmatpush1.msra.mxu0 %v492
        %672 = vmatprep.subr.mxu0 %v501
        %673 = vmatpush1.msra.mxu0 %v500
        %674 = vmatprep.subr.mxu0 %v509
        %675 = vmatpush1.msra.mxu0 %v508
        %676 = vmatprep.subr.mxu0 %v517
        %677 = vmatpush1.msra.mxu0 %v516
        %678 = vmatprep.subr.mxu0 %v525
        %679 = vmatpush1.msra.mxu0 %v524
        %680 = vmatprep.subr.mxu0 %v533
        %681 = vmatpush1.msra.mxu0 %v532
        %682 = vmatprep.subr.mxu0 %v541
        %683 = vmatpush1.msra.mxu0 %v540
        %684 = vmatprep.subr.mxu0 %v549
        %685 = vmatpush1.msra.mxu0 %v548
        %686 = vmatprep.subr.mxu0 %v557
        %687 = vmatpush1.msra.mxu0 %v556
        %688 = vmatprep.subr.mxu0 %v565
        %689 = vmatpush1.msra.mxu0 %v564
        %690 = vmatprep.subr.mxu0 %v573
        %691 = vmatpush1.msra.mxu0 %v572
        %692 = vmatprep.subr.mxu0 %v581
        %693 = vmatpush1.msra.mxu0 %v580
        %694 = vmatprep.subr.mxu0 %v589
        %695 = vmatpush1.msra.mxu0 %v588
        %696 = vmatprep.subr.mxu0 %v597
        %697 = vmatpush1.msra.mxu0 %v596
        %698 = vmatprep.subr.mxu0 %v605
        %699 = vmatpush1.msra.mxu0 %v604
        %700 = vmatprep.subr.mxu0 %v613
        %701 = vmatpush1.msra.mxu0 %v612
        %702 = vmatprep.subr.mxu0 %v621
        %703 = vmatpush1.msra.mxu0 %v620
        %704 = vmatprep.subr.mxu0 %v629
        %705 = vmatpush1.msra.mxu0 %v628
        %706 = vmatprep.subr.mxu0 %v637
        %707 = vmatpush1.msra.mxu0 %v636
        %708 = vmatprep.mubr.f32.mxu0 %v387
        %709 = vmatmul.mubr.f32.gmra.mrb[0].mxu0 %v386
        %v710 = vpop.f32.mrb[0].mxu0
        %v711 = vadd.f32 0.0, %v710
        %v712 = vpop.f32.mrb[0].mxu0
        %v713 = vadd.f32 0.0, %v712
        %714 = vdwg.mxu0
        %715 = vmatprep.subr.mxu0 %v391
        %716 = vmatpush1.msra.mxu0 %v390
        %717 = vmatprep.subr.mxu0 %v399
        %718 = vmatpush1.msra.mxu0 %v398
        %719 = vmatprep.subr.mxu0 %v407
        %720 = vmatpush1.msra.mxu0 %v406
        %721 = vmatprep.subr.mxu0 %v415
        %722 = vmatpush1.msra.mxu0 %v414
        %723 = vmatprep.subr.mxu0 %v423
        %724 = vmatpush1.msra.mxu0 %v422
        %725 = vmatprep.subr.mxu0 %v431
        %726 = vmatpush1.msra.mxu0 %v430
        %727 = vmatprep.subr.mxu0 %v439
        %728 = vmatpush1.msra.mxu0 %v438
        %729 = vmatprep.subr.mxu0 %v447
        %730 = vmatpush1.msra.mxu0 %v446
        %731 = vmatprep.subr.mxu0 %v455
        %732 = vmatpush1.msra.mxu0 %v454
        %733 = vmatprep.subr.mxu0 %v463
        %734 = vmatpush1.msra.mxu0 %v462
        %735 = vmatprep.subr.mxu0 %v471
        %736 = vmatpush1.msra.mxu0 %v470
        %737 = vmatprep.subr.mxu0 %v479
        %738 = vmatpush1.msra.mxu0 %v478
        %739 = vmatprep.subr.mxu0 %v487
        %740 = vmatpush1.msra.mxu0 %v486
        %741 = vmatprep.subr.mxu0 %v495
        %742 = vmatpush1.msra.mxu0 %v494
        %743 = vmatprep.subr.mxu0 %v503
        %744 = vmatpush1.msra.mxu0 %v502
        %745 = vmatprep.subr.mxu0 %v511
        %746 = vmatpush1.msra.mxu0 %v510
        %747 = vmatprep.subr.mxu0 %v519
        %748 = vmatpush1.msra.mxu0 %v518
        %749 = vmatprep.subr.mxu0 %v527
        %750 = vmatpush1.msra.mxu0 %v526
        %751 = vmatprep.subr.mxu0 %v535
        %752 = vmatpush1.msra.mxu0 %v534
        %753 = vmatprep.subr.mxu0 %v543
        %754 = vmatpush1.msra.mxu0 %v542
        %755 = vmatprep.subr.mxu0 %v551
        %756 = vmatpush1.msra.mxu0 %v550
        %757 = vmatprep.subr.mxu0 %v559
        %758 = vmatpush1.msra.mxu0 %v558
        %759 = vmatprep.subr.mxu0 %v567
        %760 = vmatpush1.msra.mxu0 %v566
        %761 = vmatprep.subr.mxu0 %v575
        %762 = vmatpush1.msra.mxu0 %v574
        %763 = vmatprep.subr.mxu0 %v583
        %764 = vmatpush1.msra.mxu0 %v582
        %765 = vmatprep.subr.mxu0 %v591
        %766 = vmatpush1.msra.mxu0 %v590
        %767 = vmatprep.subr.mxu0 %v599
        %768 = vmatpush1.msra.mxu0 %v598
        %769 = vmatprep.subr.mxu0 %v607
        %770 = vmatpush1.msra.mxu0 %v606
        %771 = vmatprep.subr.mxu0 %v615
        %772 = vmatpush1.msra.mxu0 %v614
        %773 = vmatprep.subr.mxu0 %v623
        %774 = vmatpush1.msra.mxu0 %v622
        %775 = vmatprep.subr.mxu0 %v631
        %776 = vmatpush1.msra.mxu0 %v630
        %777 = vmatprep.subr.mxu0 %v639
        %778 = vmatpush1.msra.mxu0 %v638
        %779 = vmatprep.mubr.f32.mxu0 %v387
        %780 = vmatmul.mubr.f32.gmra.mrb[0].mxu0 %v386
        %v781 = vpop.f32.mrb[0].mxu0
        %v782 = vadd.f32 0.0, %v781
        %v783 = vpop.f32.mrb[0].mxu0
        %v784 = vadd.f32 0.0, %v783
        %785 = vdwg.mxu0
        %786 = vmatprep.subr.mxu0 %v393
        %787 = vmatpush1.msra.mxu0 %v392
        %788 = vmatprep.subr.mxu0 %v401
        %789 = vmatpush1.msra.mxu0 %v400
        %790 = vmatprep.subr.mxu0 %v409
        %791 = vmatpush1.msra.mxu0 %v408
        %792 = vmatprep.subr.mxu0 %v417
        %793 = vmatpush1.msra.mxu0 %v416
        %794 = vmatprep.subr.mxu0 %v425
        %795 = vmatpush1.msra.mxu0 %v424
        %796 = vmatprep.subr.mxu0 %v433
        %797 = vmatpush1.msra.mxu0 %v432
        %798 = vmatprep.subr.mxu0 %v441
        %799 = vmatpush1.msra.mxu0 %v440
        %800 = vmatprep.subr.mxu0 %v449
        %801 = vmatpush1.msra.mxu0 %v448
        %802 = vmatprep.subr.mxu0 %v457
        %803 = vmatpush1.msra.mxu0 %v456
        %804 = vmatprep.subr.mxu0 %v465
        %805 = vmatpush1.msra.mxu0 %v464
        %806 = vmatprep.subr.mxu0 %v473
        %807 = vmatpush1.msra.mxu0 %v472
        %808 = vmatprep.subr.mxu0 %v481
        %809 = vmatpush1.msra.mxu0 %v480
        %810 = vmatprep.subr.mxu0 %v489
        %811 = vmatpush1.msra.mxu0 %v488
        %812 = vmatprep.subr.mxu0 %v497
        %813 = vmatpush1.msra.mxu0 %v496
        %814 = vmatprep.subr.mxu0 %v505
        %815 = vmatpush1.msra.mxu0 %v504
        %816 = vmatprep.subr.mxu0 %v513
        %817 = vmatpush1.msra.mxu0 %v512
        %818 = vmatprep.subr.mxu0 %v521
        %819 = vmatpush1.msra.mxu0 %v520
        %820 = vmatprep.subr.mxu0 %v529
        %821 = vmatpush1.msra.mxu0 %v528
        %822 = vmatprep.subr.mxu0 %v537
        %823 = vmatpush1.msra.mxu0 %v536
        %824 = vmatprep.subr.mxu0 %v545
        %825 = vmatpush1.msra.mxu0 %v544
        %826 = vmatprep.subr.mxu0 %v553
        %827 = vmatpush1.msra.mxu0 %v552
        %828 = vmatprep.subr.mxu0 %v561
        %829 = vmatpush1.msra.mxu0 %v560
        %830 = vmatprep.subr.mxu0 %v569
        %831 = vmatpush1.msra.mxu0 %v568
        %832 = vmatprep.subr.mxu0 %v577
        %833 = vmatpush1.msra.mxu0 %v576
        %834 = vmatprep.subr.mxu0 %v585
        %835 = vmatpush1.msra.mxu0 %v584
        %836 = vmatprep.subr.mxu0 %v593
        %837 = vmatpush1.msra.mxu0 %v592
        %838 = vmatprep.subr.mxu0 %v601
        %839 = vmatpush1.msra.mxu0 %v600
        %840 = vmatprep.subr.mxu0 %v609
        %841 = vmatpush1.msra.mxu0 %v608
        %842 = vmatprep.subr.mxu0 %v617
        %843 = vmatpush1.msra.mxu0 %v616
        %844 = vmatprep.subr.mxu0 %v625
        %845 = vmatpush1.msra.mxu0 %v624
        %846 = vmatprep.subr.mxu0 %v633
        %847 = vmatpush1.msra.mxu0 %v632
        %848 = vmatprep.subr.mxu0 %v641
        %849 = vmatpush1.msra.mxu0 %v640
        %850 = vmatprep.mubr.f32.mxu0 %v387
        %851 = vmatmul.mubr.f32.gmra.mrb[0].mxu0 %v386
        %v852 = vpop.f32.mrb[0].mxu0
        %v853 = vadd.f32 0.0, %v852
        %v854 = vpop.f32.mrb[0].mxu0
        %v855 = vadd.f32 0.0, %v854
        %856 = vdwg.mxu0
        %857 = vmatprep.subr.mxu0 %v395
        %858 = vmatpush1.msra.mxu0 %v394
        %859 = vmatprep.subr.mxu0 %v403
        %860 = vmatpush1.msra.mxu0 %v402
        %861 = vmatprep.subr.mxu0 %v411
        %862 = vmatpush1.msra.mxu0 %v410
        %863 = vmatprep.subr.mxu0 %v419
        %864 = vmatpush1.msra.mxu0 %v418
        %865 = vmatprep.subr.mxu0 %v427
        %866 = vmatpush1.msra.mxu0 %v426
        %867 = vmatprep.subr.mxu0 %v435
        %868 = vmatpush1.msra.mxu0 %v434
        %869 = vmatprep.subr.mxu0 %v443
        %870 = vmatpush1.msra.mxu0 %v442
        %871 = vmatprep.subr.mxu0 %v451
        %872 = vmatpush1.msra.mxu0 %v450
        %873 = vmatprep.subr.mxu0 %v459
        %874 = vmatpush1.msra.mxu0 %v458
        %875 = vmatprep.subr.mxu0 %v467
        %876 = vmatpush1.msra.mxu0 %v466
        %877 = vmatprep.subr.mxu0 %v475
        %878 = vmatpush1.msra.mxu0 %v474
        %879 = vmatprep.subr.mxu0 %v483
        %880 = vmatpush1.msra.mxu0 %v482
        %881 = vmatprep.subr.mxu0 %v491
        %882 = vmatpush1.msra.mxu0 %v490
        %883 = vmatprep.subr.mxu0 %v499
        %884 = vmatpush1.msra.mxu0 %v498
        %885 = vmatprep.subr.mxu0 %v507
        %886 = vmatpush1.msra.mxu0 %v506
        %887 = vmatprep.subr.mxu0 %v515
        %888 = vmatpush1.msra.mxu0 %v514
        %889 = vmatprep.subr.mxu0 %v523
        %890 = vmatpush1.msra.mxu0 %v522
        %891 = vmatprep.subr.mxu0 %v531
        %892 = vmatpush1.msra.mxu0 %v530
        %893 = vmatprep.subr.mxu0 %v539
        %894 = vmatpush1.msra.mxu0 %v538
        %895 = vmatprep.subr.mxu0 %v547
        %896 = vmatpush1.msra.mxu0 %v546
        %897 = vmatprep.subr.mxu0 %v555
        %898 = vmatpush1.msra.mxu0 %v554
        %899 = vmatprep.subr.mxu0 %v563
        %900 = vmatpush1.msra.mxu0 %v562
        %901 = vmatprep.subr.mxu0 %v571
        %902 = vmatpush1.msra.mxu0 %v570
        %903 = vmatprep.subr.mxu0 %v579
        %904 = vmatpush1.msra.mxu0 %v578
        %905 = vmatprep.subr.mxu0 %v587
        %906 = vmatpush1.msra.mxu0 %v586
        %907 = vmatprep.subr.mxu0 %v595
        %908 = vmatpush1.msra.mxu0 %v594
        %909 = vmatprep.subr.mxu0 %v603
        %910 = vmatpush1.msra.mxu0 %v602
        %911 = vmatprep.subr.mxu0 %v611
        %912 = vmatpush1.msra.mxu0 %v610
        %913 = vmatprep.subr.mxu0 %v619
        %914 = vmatpush1.msra.mxu0 %v618
        %915 = vmatprep.subr.mxu0 %v627
        %916 = vmatpush1.msra.mxu0 %v626
        %917 = vmatprep.subr.mxu0 %v635
        %918 = vmatpush1.msra.mxu0 %v634
        %919 = vmatprep.subr.mxu0 %v643
        %920 = vmatpush1.msra.mxu0 %v642
        %921 = vmatprep.mubr.f32.mxu0 %v387
        %922 = vmatmul.mubr.f32.gmra.mrb[0].mxu0 %v386
        %v923 = vpop.f32.mrb[0].mxu0
        %v924 = vadd.f32 0.0, %v923
        %v925 = vpop.f32.mrb[0].mxu0
        %v926 = vadd.f32 0.0, %v925
        %927 = vdwg.mxu0
        %v928 = vld [vmem:[%s4] sm:$0x1]
        %v929 = vadd.f32 %v928, %v711
        %v932 = vunpack.c.l.s4 1966171168
        %v933 = vunpack.c.0.s8 %v932
        %v934 = vlaneseq
        %v935 = vshrl.u32 %v934, 7
        %v936 = vsub.s32 %v933, %v935
        %v937 = vrot.slane %v713, %v936
        %v938 = vcombine.high %v937, %v937
        %v940 = vunpack.c.l.s4 1966171168
        %v941 = vunpack.c.0.s8 %v940
        %v942 = vlaneseq
        %v943 = vshrl.u32 %v942, 7
        %v944 = vsub.s32 %v941, %v943
        %v945 = vrot.slane %v938, %v944
        %v947 = vadd.f32 %v929, %v945
        %v950 = vunpack.c.l.s4 1966171168
        %v951 = vunpack.c.0.s8 %v950
        %v952 = vlaneseq
        %v953 = vshrl.u32 %v952, 7
        %v954 = vsub.s32 %v951, %v953
        %v955 = vrot.slane %v782, %v954
        %v957 = vunpack.c.l.s4 1966171168
        %v958 = vunpack.c.0.s8 %v957
        %v959 = vlaneseq
        %v960 = vshrl.u32 %v959, 7
        %v961 = vsub.s32 %v958, %v960
        %v962 = vrot.slane %v955, %v961
        %v963 = vcombine.high %v962, %v962
        %v965 = vadd.f32 %v947, %v963
        %v968 = vunpack.c.l.s4 1966171168
        %v969 = vunpack.c.0.s8 %v968
        %v970 = vlaneseq
        %v971 = vshrl.u32 %v970, 7
        %v972 = vsub.s32 %v969, %v971
        %v973 = vrot.slane %v784, %v972
        %v974 = vcombine.high %v973, %v973
        %v976 = vunpack.c.l.s4 1966171168
        %v977 = vunpack.c.0.s8 %v976
        %v978 = vlaneseq
        %v979 = vshrl.u32 %v978, 7
        %v980 = vsub.s32 %v977, %v979
        %v981 = vrot.slane %v974, %v980
        %v982 = vcombine.high %v981, %v981
        %v984 = vadd.f32 %v965, %v982
        %v986 = vcombine.high %v853, %v853
        %v988 = vunpack.c.l.s4 1966171168
        %v989 = vunpack.c.0.s8 %v988
        %v990 = vlaneseq
        %v991 = vshrl.u32 %v990, 7
        %v992 = vsub.s32 %v989, %v991
        %v993 = vrot.slane %v986, %v992
        %v995 = vunpack.c.l.s4 1966171168
        %v996 = vunpack.c.0.s8 %v995
        %v997 = vlaneseq
        %v998 = vshrl.u32 %v997, 7
        %v999 = vsub.s32 %v996, %v998
        %v1000 = vrot.slane %v993, %v999
        %v1002 = vadd.f32 %v984, %v1000
        %v1004 = vcombine.high %v855, %v855
        %v1006 = vunpack.c.l.s4 1966171168
        %v1007 = vunpack.c.0.s8 %v1006
        %v1008 = vlaneseq
        %v1009 = vshrl.u32 %v1008, 7
        %v1010 = vsub.s32 %v1007, %v1009
        %v1011 = vrot.slane %v1004, %v1010
        %v1012 = vcombine.high %v1011, %v1011
        %v1014 = vunpack.c.l.s4 1966171168
        %v1015 = vunpack.c.0.s8 %v1014
        %v1016 = vlaneseq
        %v1017 = vshrl.u32 %v1016, 7
        %v1018 = vsub.s32 %v1015, %v1017
        %v1019 = vrot.slane %v1012, %v1018
        %v1021 = vadd.f32 %v1002, %v1019
        %v1023 = vcombine.high %v924, %v924
        %v1025 = vunpack.c.l.s4 1966171168
        %v1026 = vunpack.c.0.s8 %v1025
        %v1027 = vlaneseq
        %v1028 = vshrl.u32 %v1027, 7
        %v1029 = vsub.s32 %v1026, %v1028
        %v1030 = vrot.slane %v1023, %v1029
        %v1032 = vunpack.c.l.s4 1966171168
        %v1033 = vunpack.c.0.s8 %v1032
        %v1034 = vlaneseq
        %v1035 = vshrl.u32 %v1034, 7
        %v1036 = vsub.s32 %v1033, %v1035
        %v1037 = vrot.slane %v1030, %v1036
        %v1038 = vcombine.high %v1037, %v1037
        %v1040 = vadd.f32 %v1021, %v1038
        %v1042 = vcombine.high %v926, %v926
        %v1044 = vunpack.c.l.s4 1966171168
        %v1045 = vunpack.c.0.s8 %v1044
        %v1046 = vlaneseq
        %v1047 = vshrl.u32 %v1046, 7
        %v1048 = vsub.s32 %v1045, %v1047
        %v1049 = vrot.slane %v1042, %v1048
        %v1050 = vcombine.high %v1049, %v1049
        %v1052 = vunpack.c.l.s4 1966171168
        %v1053 = vunpack.c.0.s8 %v1052
        %v1054 = vlaneseq
        %v1055 = vshrl.u32 %v1054, 7
        %v1056 = vsub.s32 %v1053, %v1055
        %v1057 = vrot.slane %v1050, %v1056
        %v1058 = vcombine.high %v1057, %v1057
        %v1060 = vadd.f32 %v1040, %v1058
        %1061 = vst [vmem:[%s216] sm:$0x1] %v1060
        %s1062 = sand.u32 %s137, 1
        %s1063 = scalar_lea.sflag [#allocation3], %s1062
        %s1064 = sand.u32 %s137, 1
        %s1065 = scalar_lea.vmem [#allocation2], %s1064
        // Predicated region
        $region41: #{pretrain_classifier_forward.1} parent=39 // pred_check
          %p1066 = pneg %p147
        $region42: #{pretrain_classifier_forward.1} parent=39 // pred_check_branch
          %1068 = sbr.rel (%p1066) target = $region44
        $region43: #{pretrain_classifier_forward.1} parent=39 // pred_region
          %s1070 = ssub.s32 16, 16
          %1071 = vsyncadd %s1063, %s1070
          %s1072 = smul.addr %s19, 16
          %s1073 = scalar_lea.hbm %s5, %s1072
          %s1075 = sshll.u32 %s1065, 4
          %s1076 = int_to_ptr.vmem [resolvable:$true] %s1075
          %1078 = dma.vmem_to_hbm [thread:$0]  %s1076, 16, %s1073, %s1063
        $region44: #{pretrain_classifier_forward.1} parent=39 // pred_fallthru
          _
      $region40: #{pretrain_classifier_forward.1} parent=5 // pred_fallthru
        _
      %p1079 = scmp.le.s32.totalorder 2, %s14
      // Predicated region
      $region45: #{pretrain_classifier_forward.1} parent=5 // pred_check
        %p1080 = pneg %p1079
      $region46: #{pretrain_classifier_forward.1} parent=5 // pred_check_branch
        %1082 = sbr.rel (%p1080) target = $region48
      $region47: #{pretrain_classifier_forward.1} parent=5 // pred_region
        %s1083 = ssub.s32 %s14, 2
        // Predicated region
        $region49: #{pretrain_classifier_forward.1} parent=47 // pred_check
          %p1084 = pneg %p153
        $region50: #{pretrain_classifier_forward.1} parent=47 // pred_check_branch
          %1086 = sbr.rel (%p1084) target = $region52
        $region51: #{pretrain_classifier_forward.1} parent=47 // pred_region
          %s1087 = sand.u32 %s138, 1
          %s1088 = scalar_lea.sflag [#allocation3], %s1087
          %s1089 = sand.u32 %s138, 1
          %s1090 = scalar_lea.vmem [#allocation2], %s1089
          %1091 = dma.done %s1088, 16
        $region52: #{pretrain_classifier_forward.1} parent=47 // pred_fallthru
          _
      $region48: #{pretrain_classifier_forward.1} parent=5 // pred_fallthru
        _
    $region6: #{pretrain_classifier_forward.1} parent=1 // loop_footer
      %s18 = sadd.s32 1, %s14
    $region7: #{pretrain_classifier_forward.1} parent=1 // loop_footer_branch
      %13 = sbr.rel target = $region3
    $region8: #{pretrain_classifier_forward.1} parent=1 // loop_exit
      _
    %1092 = vsyncpa [#allocation3], 1
    %s1093 = scalar_lea.sflag [#allocation3], 1
    %1094 = vsyncpa %s1093, 1

</llo_original>
